<compile_context>
chip_gen: v7x
topology: tpu7x:2x2x1
jax: 0.10.0
libtpu: 0.0.40
codegen_flags: <defaults>
</compile_context>

<pallas_src>
import jax
import jax.numpy as jnp
from jax.experimental import pallas as pl
from jax.experimental.pallas import tpu as pltpu


def _round_up(n, m):
    return ((n + m - 1) // m) * m


def _low_rank_kernel(x_ref, ut_ref, vs_ref, o_ref):
    """x_ref: (tm, D); ut_ref: (R, D) = U^T; vs_ref: (R, D) = scale * V."""
    x = x_ref[...]
    ut = ut_ref[...]                                   # (R, D) f32, resident
    vs = vs_ref[...]                                   # (R, D) f32, resident
    rank = ut.shape[0]                                 # static

    xf = x.astype(jnp.float32)                         # compute in f32

    # cross = scale * ((x @ U) @ V), built rank-by-rank on the VPU/XLU.
    # Initialize with the rank-0 term (saves a whole-tile zero fill + add).
    cross = jnp.sum(xf * ut[0:1, :], axis=-1, keepdims=True) * vs[0:1, :]
    for r in range(1, rank):                           # static unroll, R tiny
        cross = cross + (
            jnp.sum(xf * ut[r:r + 1, :], axis=-1, keepdims=True)
            * vs[r:r + 1, :])

    # out = x + scale * (x * cross_raw) = x * (1 + cross).  Cast x inline so
    # the widen-cast can fuse into the blend/store (store-slot saving on v5e).
    o_ref[...] = (x.astype(jnp.float32) * (1.0 + cross)).astype(o_ref.dtype)


def low_rank_interaction(x, U, V, *, max_tile_rows=512):
    """x: (..., D); U: (D, R); V: (R, D).  Returns x + (1/sqrt(R))*x*((x@U)@V)."""
    orig_shape = x.shape
    D = orig_shape[-1]
    rank = U.shape[1]
    assert U.shape == (D, rank) and V.shape == (rank, D)
    scale = 1.0 / (rank ** 0.5)

    x2 = x.reshape(-1, D)
    M = x2.shape[0]

    # Tiny resident params: U transposed, scale folded into V, kept in f32.
    ut = U.T.astype(jnp.float32)            # (R, D)
    vs = (scale * V).astype(jnp.float32)    # (R, D)

    # ---- tile-size selection ------------------------------------------------
    itemsize = jnp.dtype(x2.dtype).itemsize
    sub = 16 if itemsize == 2 else 8        # sublane granule for the I/O dtype
    Dp = _round_up(D, 128)                  # physical lane footprint (no data pad)

    try:
        vmem_cap = int(pltpu.get_tpu_info().vmem_capacity_bytes)
    except Exception:
        vmem_cap = 64 * 1024 * 1024         # conservative (v7x-sized) fallback

    # Streamed bytes per tile row: double-buffered input + output blocks plus
    # the f32 temporaries (xf, cross, per-rank product) the kernel materializes.
    bytes_per_row = 4 * Dp * itemsize + 3 * Dp * 4
    # 128-MiB-VMEM parts (v5e/v6e) get a big streaming budget (roofline ~85% at
    # 512-row tiles); 64-MiB v7x stays conservative so params/scratch still fit.
    target_stream = (48 << 20) if vmem_cap >= (100 << 20) else (24 << 20)

    if M <= sub:
        tm = M                              # single block == full row extent
    else:
        budget_rows = max(sub, (target_stream // bytes_per_row) // sub * sub)
        half_rows = _round_up(-(-M // 2), sub)   # guarantee >=2 grid steps
        tm = max(sub, min(max_tile_rows, budget_rows, half_rows))
        # Prefer an even trip count so both v7x TensorCores stay balanced.
        g = pl.cdiv(M, tm)
        if g > 1 and g % 2 == 1:
            tm_even = _round_up(-(-M // (g + 1)), sub)
            if sub <= tm_even <= tm:
                tm = tm_even

    grid = (pl.cdiv(M, tm),)

    # VMEM limit: streamed blocks + f32 temps + resident params, with headroom
    # below physical VMEM (important on v7x's 64 MiB).
    footprint = 4 * tm * Dp * itemsize + 3 * tm * Dp * 4 + 2 * rank * Dp * 4
    vmem_limit = int(min(vmem_cap - (8 << 20),
                         max(32 << 20, footprint + (4 << 20))))
    vmem_limit = max(vmem_limit, footprint + (2 << 20))

    out = pl.pallas_call(
        _low_rank_kernel,
        out_shape=jax.ShapeDtypeStruct((M, D), x.dtype),
        grid_spec=pltpu.PrefetchScalarGridSpec(
            num_scalar_prefetch=0,
            grid=grid,
            in_specs=[
                pl.BlockSpec((tm, D), lambda i: (i, 0)),      # x row tile
                pl.BlockSpec((rank, D), lambda i: (0, 0)),    # U^T (resident)
                pl.BlockSpec((rank, D), lambda i: (0, 0)),    # scale*V (resident)
            ],
            out_specs=pl.BlockSpec((tm, D), lambda i: (i, 0)),
        ),
        compiler_params=pltpu.CompilerParams(
            dimension_semantics=("parallel",),   # shards across v7x's 2 TCs
            vmem_limit_bytes=vmem_limit,
        ),
    )(x2, ut, vs)

    return out.reshape(orig_shape)


def _reference(x, U, V, scale):
    hi = jax.lax.Precision.HIGHEST
    t = jnp.matmul(x, U, precision=hi)
    cross = jnp.matmul(t, V, precision=hi)
    return x + scale * (x * cross)


if __name__ == "__main__":
    key = jax.random.PRNGKey(0)
    k1, k2, k3, k4 = jax.random.split(key, 4)

    # Small shapes: batch=2, seq=8, input_dim=128, rank=2.
    B, S, D, R = 2, 8, 128, 2
    x = jax.random.normal(k1, (B, S, D), dtype=jnp.float32)
    U = jax.random.normal(k2, (D, R), dtype=jnp.float32)
    V = jax.random.normal(k3, (R, D), dtype=jnp.float32)

    out = jax.block_until_ready(low_rank_interaction(x, U, V))
    ref = _reference(x, U, V, 1.0 / R ** 0.5)
    assert out.shape == (B, S, D)
    assert jnp.allclose(out, ref, atol=2e-3, rtol=2e-3), \
        float(jnp.max(jnp.abs(out - ref)))

    # Ragged row count (M = 14 not a multiple of the row tile): exercises the
    # no-padding wrapper path (grid = cdiv(M, tm); OOB rows of the last block
    # are read as garbage but their writes are dropped by Pallas).
    x_ragged = jax.random.normal(k4, (2, 7, D), dtype=jnp.float32)
    out2 = jax.block_until_ready(low_rank_interaction(x_ragged, U, V))
    ref2 = _reference(x_ragged, U, V, 1.0 / R ** 0.5)
    assert out2.shape == x_ragged.shape
    assert jnp.allclose(out2, ref2, atol=2e-3, rtol=2e-3), \
        float(jnp.max(jnp.abs(out2 - ref2)))

    print("KERNEL_OK")
</pallas_src>

<mosaic_0001>
module attributes {stable_mosaic.version = 11 : i64} {
  func.func @_low_rank_kernel(%arg0: i32, %arg1: memref<8x128xf32, #tpu.memory_space<vmem>>, %arg2: memref<2x128xf32, #tpu.memory_space<vmem>>, %arg3: memref<2x128xf32, #tpu.memory_space<vmem>>, %arg4: memref<8x128xf32, #tpu.memory_space<vmem>>) attributes {dimension_semantics = [#tpu.dimension_semantics<parallel>], iteration_bounds = array<i64: 2>, scalar_prefetch = 0 : i64, scratch_operands = 0 : i64, tpu.core_type = #tpu.core_type<tc>, window_params = [{transform_indices = @transform_0, window_bounds = array<i64: 8, 128>}, {pipeline_mode = #tpu.pipeline_mode<synchronous>, transform_indices = @transform_1, window_bounds = array<i64: 2, 128>}, {pipeline_mode = #tpu.pipeline_mode<synchronous>, transform_indices = @transform_2, window_bounds = array<i64: 2, 128>}, {transform_indices = @transform_3, window_bounds = array<i64: 8, 128>}]} {
    %c0 = arith.constant 0 : index
    %c0_0 = arith.constant 0 : index
    %0 = vector.load %arg1[%c0, %c0_0] : memref<8x128xf32, #tpu.memory_space<vmem>>, vector<8x128xf32>
    %c0_1 = arith.constant 0 : index
    %c0_2 = arith.constant 0 : index
    %1 = vector.load %arg2[%c0_1, %c0_2] : memref<2x128xf32, #tpu.memory_space<vmem>>, vector<2x128xf32>
    %c0_3 = arith.constant 0 : index
    %c0_4 = arith.constant 0 : index
    %2 = vector.load %arg3[%c0_3, %c0_4] : memref<2x128xf32, #tpu.memory_space<vmem>>, vector<2x128xf32>
    %3 = vector.extract_strided_slice %1 {offsets = [0, 0], sizes = [1, 128], strides = [1, 1]} : vector<2x128xf32> to vector<1x128xf32>
    %4 = vector.broadcast %3 : vector<1x128xf32> to vector<8x128xf32>
    %5 = arith.mulf %0, %4 : vector<8x128xf32>
    %cst = arith.constant dense<0.000000e+00> : vector<8xf32>
    %6 = vector.multi_reduction <add>, %5, %cst [1] : vector<8x128xf32> to vector<8xf32>
    %7 = vector.shape_cast %6 : vector<8xf32> to vector<8x1xf32>
    %8 = vector.extract_strided_slice %2 {offsets = [0, 0], sizes = [1, 128], strides = [1, 1]} : vector<2x128xf32> to vector<1x128xf32>
    %9 = vector.broadcast %7 : vector<8x1xf32> to vector<8x128xf32>
    %10 = vector.broadcast %8 : vector<1x128xf32> to vector<8x128xf32>
    %11 = arith.mulf %9, %10 : vector<8x128xf32>
    %12 = vector.extract_strided_slice %1 {offsets = [1, 0], sizes = [1, 128], strides = [1, 1]} : vector<2x128xf32> to vector<1x128xf32>
    %13 = vector.broadcast %12 : vector<1x128xf32> to vector<8x128xf32>
    %14 = arith.mulf %0, %13 : vector<8x128xf32>
    %cst_5 = arith.constant dense<0.000000e+00> : vector<8xf32>
    %15 = vector.multi_reduction <add>, %14, %cst_5 [1] : vector<8x128xf32> to vector<8xf32>
    %16 = vector.shape_cast %15 : vector<8xf32> to vector<8x1xf32>
    %17 = vector.extract_strided_slice %2 {offsets = [1, 0], sizes = [1, 128], strides = [1, 1]} : vector<2x128xf32> to vector<1x128xf32>
    %18 = vector.broadcast %16 : vector<8x1xf32> to vector<8x128xf32>
    %19 = vector.broadcast %17 : vector<1x128xf32> to vector<8x128xf32>
    %20 = arith.mulf %18, %19 : vector<8x128xf32>
    %21 = arith.addf %11, %20 : vector<8x128xf32>
    %cst_6 = arith.constant 1.000000e+00 : f32
    %22 = vector.broadcast %cst_6 : f32 to vector<8x128xf32>
    %23 = arith.addf %22, %21 : vector<8x128xf32>
    %24 = arith.mulf %0, %23 : vector<8x128xf32>
    %c0_7 = arith.constant 0 : index
    %c0_8 = arith.constant 0 : index
    %25 = vector.load %arg4[%c0_7, %c0_8] : memref<8x128xf32, #tpu.memory_space<vmem>>, vector<8x128xf32>
    tpu.vector_store %arg4[%c0_7, %c0_8], %24 {strides = array<i32>} : memref<8x128xf32, #tpu.memory_space<vmem>>, vector<8x128xf32>,
    return
  }
  func.func @transform_0(%arg0: i32) -> (i32, i32) {
    %c0_i32 = arith.constant 0 : i32
    %c0_i32_0 = arith.constant 0 : i32
    return %arg0, %c0_i32 : i32, i32
  }
  func.func @transform_1(%arg0: i32) -> (i32, i32) {
    %c0_i32 = arith.constant 0 : i32
    %c0_i32_0 = arith.constant 0 : i32
    %c0_i32_1 = arith.constant 0 : i32
    return %c0_i32, %c0_i32_0 : i32, i32
  }
  func.func @transform_2(%arg0: i32) -> (i32, i32) {
    %c0_i32 = arith.constant 0 : i32
    %c0_i32_0 = arith.constant 0 : i32
    %c0_i32_1 = arith.constant 0 : i32
    return %c0_i32, %c0_i32_0 : i32, i32
  }
  func.func @transform_3(%arg0: i32) -> (i32, i32) {
    %c0_i32 = arith.constant 0 : i32
    %c0_i32_0 = arith.constant 0 : i32
    return %arg0, %c0_i32 : i32, i32
  }
}

</mosaic_0001>

<llo_original>
// kernel: tpu_custom_call.1
$region0: #{tpu_custom_call.1}
  #allocation0 [shape = 'u32[]', space=smem, size = 0x4, offset = 0x4, fixed_abs, tag = 'smem constant byte address 0x4 - core index']
  #allocation1 [shape = 'u32[144,128]{1,0:T(1,128)}', space=vmem, size = 0x12000, scoped, tag = 'internal scratch']
  %s0 = inlined_call_operand.hbm [shape: f32[16,128], index: 0, kind: input, shape index: {}]
  %s1 = inlined_call_operand.vmem [shape: f32[2,128], index: 1, kind: input, shape index: {}]
  %s2 = inlined_call_operand.vmem [shape: f32[2,128], index: 2, kind: input, shape index: {}]
  %s3 = inlined_call_operand.hbm [shape: f32[16,128], index: 3, kind: output, shape index: {}]
  %s4 = sld [smem:[#allocation0]]
  $region49: #{tpu_custom_call.1} parent=0
    _
  %s6 = ssub.s32 1, %s4
  %s7 = scalar_select 0, %s6, %s4
  $region1: #{tpu_custom_call.1} parent=0
    #allocation2 [shape = 'u8[8192]{0}', space=vmem, size = 0x2000, scoped, tag = 'input window, operand 0']
    #allocation3 [shape = 's32[2]{0}', space=sflag, size = 0x8, scoped, tag = 'scoped memory for tpu_custom_call.1']
    #allocation4 [shape = 's32[2]{0}', space=sflag, size = 0x8, scoped, tag = 'scoped memory for tpu_custom_call.1']
    #allocation5 [shape = 'u8[8192]{0}', space=vmem, size = 0x2000, scoped, tag = 'output window, operand 0']
    %8 = vsyncpa [#allocation3], 0
    %s9 = scalar_lea.sflag [#allocation3], 1
    %10 = vsyncpa %s9, 0
    %11 = vsyncpa [#allocation4], 0
    %s12 = scalar_lea.sflag [#allocation4], 1
    %13 = vsyncpa %s12, 0
    loop: start=0, step=1, limit=4
    $region2: #{tpu_custom_call.1} parent=1 // loop_pre_header
      _
    $region3: #{tpu_custom_call.1} parent=1 // loop_header
      %s15 = sphi 0, %s19
      %p16 = scmp.ge.s32.totalorder %s15, 4
      %s25 = sphi 0, %s27
      %s28 = sphi 0, %s25
      %s29 = sphi 0, %s28
      %s45 = sphi 0, %s29
      %s49 = sphi 0, %s49
      %s51 = sphi 0, %s49
      %s52 = sphi 0, %s51
      %s66 = sphi 0, %s52
      %s70 = sphi 0, %s70
      %s72 = sphi 0, %s70
      %s73 = sphi 0, %s72
      %s87 = sphi 0, %s73
      %s93 = sphi 0, %s95
      %s96 = sphi 0, %s93
      %s97 = sphi 0, %s96
      %s113 = sphi 0, %s97
    $region4: #{tpu_custom_call.1} parent=1 // loop_header_branch
      %18 = sbr.rel (%p16) target = $region8
    $region5: #{tpu_custom_call.1} parent=1 // loop_body
      %s20 = ssub.s32 %s15, 1
      %s21 = ssub.s32 %s15, 2
      %s22 = sadd.s32 %s15, 1
      %s23 = ssub.s32 %s15, %s22
      %p24 = scmp.eq.s32.totalorder %s23, 0
      %s26 = sadd.s32 %s25, 1
      %s27 = scalar_select %p24, %s25, %s26
      %p30 = pneg %p24
      %p31 = scmp.eq.s32.totalorder %s15, 1
      %p32 = por %p30, %p31
      %p33 = scmp.ne.s32.totalorder %s25, %s28
      %p34 = scmp.eq.s32.totalorder %s15, 0
      %p35 = por %p33, %p34
      %p36 = scmp.ne.s32.totalorder %s25, %s28
      %p37 = scmp.eq.s32.totalorder %s20, 1
      %p38 = por %p36, %p37
      %p39 = scmp.ne.s32.totalorder %s28, %s29
      %p40 = scmp.eq.s32.totalorder %s20, 0
      %p41 = por %p39, %p40
      %p42 = scmp.ne.s32.totalorder %s28, %s29
      %p43 = scmp.eq.s32.totalorder %s21, 1
      %p44 = por %p42, %p43
      %p46 = scmp.ne.s32.totalorder %s29, %s45
      %p47 = scmp.eq.s32.totalorder %s21, 0
      %p48 = por %p46, %p47
      %s50 = sadd.s32 %s49, 1
      %p53 = scmp.eq.s32.totalorder %s15, 1
      %p54 = scmp.ne.s32.totalorder %s49, %s51
      %p55 = scmp.eq.s32.totalorder %s15, 0
      %p56 = por %p54, %p55
      %p57 = scmp.ne.s32.totalorder %s49, %s51
      %p58 = scmp.eq.s32.totalorder %s20, 1
      %p59 = por %p57, %p58
      %p60 = scmp.ne.s32.totalorder %s51, %s52
      %p61 = scmp.eq.s32.totalorder %s20, 0
      %p62 = por %p60, %p61
      %p63 = scmp.ne.s32.totalorder %s51, %s52
      %p64 = scmp.eq.s32.totalorder %s21, 1
      %p65 = por %p63, %p64
      %p67 = scmp.ne.s32.totalorder %s52, %s66
      %p68 = scmp.eq.s32.totalorder %s21, 0
      %p69 = por %p67, %p68
      %s71 = sadd.s32 %s70, 1
      %p74 = scmp.eq.s32.totalorder %s15, 1
      %p75 = scmp.ne.s32.totalorder %s70, %s72
      %p76 = scmp.eq.s32.totalorder %s15, 0
      %p77 = por %p75, %p76
      %p78 = scmp.ne.s32.totalorder %s70, %s72
      %p79 = scmp.eq.s32.totalorder %s20, 1
      %p80 = por %p78, %p79
      %p81 = scmp.ne.s32.totalorder %s72, %s73
      %p82 = scmp.eq.s32.totalorder %s20, 0
      %p83 = por %p81, %p82
      %p84 = scmp.ne.s32.totalorder %s72, %s73
      %p85 = scmp.eq.s32.totalorder %s21, 1
      %p86 = por %p84, %p85
      %p88 = scmp.ne.s32.totalorder %s73, %s87
      %p89 = scmp.eq.s32.totalorder %s21, 0
      %p90 = por %p88, %p89
      %s91 = ssub.s32 %s15, %s22
      %p92 = scmp.eq.s32.totalorder %s91, 0
      %s94 = sadd.s32 %s93, 1
      %s95 = scalar_select %p92, %s93, %s94
      %p98 = pneg %p92
      %p99 = scmp.eq.s32.totalorder %s15, 1
      %p100 = por %p98, %p99
      %p101 = scmp.ne.s32.totalorder %s93, %s96
      %p102 = scmp.eq.s32.totalorder %s15, 0
      %p103 = por %p101, %p102
      %p104 = scmp.ne.s32.totalorder %s93, %s96
      %p105 = scmp.eq.s32.totalorder %s20, 1
      %p106 = por %p104, %p105
      %p107 = scmp.ne.s32.totalorder %s96, %s97
      %p108 = scmp.eq.s32.totalorder %s20, 0
      %p109 = por %p107, %p108
      %p110 = scmp.ne.s32.totalorder %s96, %s97
      %p111 = scmp.eq.s32.totalorder %s21, 1
      %p112 = por %p110, %p111
      %p114 = scmp.ne.s32.totalorder %s97, %s113
      %p115 = scmp.eq.s32.totalorder %s21, 0
      %p116 = por %p114, %p115
      %p117 = scmp.le.s32.totalorder 1, %s15
      %p118 = scmp.lt.s32.totalorder %s15, 3
      %p119 = pnand %p117, %p118
      %p120 = pneg %p119
      // Predicated region
      $region9: #{tpu_custom_call.1} parent=5 // pred_check
        _
      $region10: #{tpu_custom_call.1} parent=5 // pred_check_branch
        %122 = sbr.rel (%p119) target = $region12
      $region11: #{tpu_custom_call.1} parent=5 // pred_region
        %s123 = ssub.s32 %s15, 1
        // Predicated region
        $region13: #{tpu_custom_call.1} parent=11 // pred_check
          %p124 = pneg %p62
        $region14: #{tpu_custom_call.1} parent=11 // pred_check_branch
          %126 = sbr.rel (%p124) target = $region16
        $region15: #{tpu_custom_call.1} parent=11 // pred_region
          _
        $region16: #{tpu_custom_call.1} parent=11 // pred_fallthru
          _
        // Predicated region
        $region17: #{tpu_custom_call.1} parent=11 // pred_check
          %p127 = pneg %p83
        $region18: #{tpu_custom_call.1} parent=11 // pred_check_branch
          %129 = sbr.rel (%p127) target = $region20
        $region19: #{tpu_custom_call.1} parent=11 // pred_region
          _
        $region20: #{tpu_custom_call.1} parent=11 // pred_fallthru
          _
      $region12: #{tpu_custom_call.1} parent=5 // pred_fallthru
        _
      %p130 = scmp.lt.s32.totalorder %s15, 2
      // Predicated region
      $region21: #{tpu_custom_call.1} parent=5 // pred_check
        %p131 = pneg %p130
      $region22: #{tpu_custom_call.1} parent=5 // pred_check_branch
        %133 = sbr.rel (%p131) target = $region24
      $region23: #{tpu_custom_call.1} parent=5 // pred_region
        // Predicated region
        $region25: #{tpu_custom_call.1} parent=23 // pred_check
          %p134 = pneg %p35
        $region26: #{tpu_custom_call.1} parent=23 // pred_check_branch
          %136 = sbr.rel (%p134) target = $region28
        $region27: #{tpu_custom_call.1} parent=23 // pred_region
          %s137 = sand.u32 %s25, 1
          %s138 = scalar_lea.sflag [#allocation3], %s137
          %s139 = sand.u32 %s25, 1
          %s140 = smul.addr %s139, 8
          %s141 = scalar_lea.vmem [#allocation2], %s140
          %s143 = ssub.s32 128, 128
          %144 = vsyncadd %s138, %s143
          %s145 = smul.addr %s15, 128
          %s146 = scalar_lea.hbm %s0, %s145
          %s148 = sshll.u32 %s141, 4
          %s149 = int_to_ptr.vmem [resolvable:$true] %s148
          %151 = dma.hbm_to_vmem [thread:$0]  %s146, 128, %s149, %s138
        $region28: #{tpu_custom_call.1} parent=23 // pred_fallthru
          _
      $region24: #{tpu_custom_call.1} parent=5 // pred_fallthru
        _
      %p152 = scmp.le.s32.totalorder 1, %s15
      %p153 = scmp.lt.s32.totalorder %s15, 3
      %p154 = pnand %p152, %p153
      %p155 = pneg %p154
      // Predicated region
      $region29: #{tpu_custom_call.1} parent=5 // pred_check
        _
      $region30: #{tpu_custom_call.1} parent=5 // pred_check_branch
        %157 = sbr.rel (%p154) target = $region32
      $region31: #{tpu_custom_call.1} parent=5 // pred_region
        %s158 = ssub.s32 %s15, 1
        %s159 = sand.u32 %s28, 1
        %s160 = scalar_lea.sflag [#allocation3], %s159
        %s161 = sand.u32 %s28, 1
        %s162 = smul.addr %s161, 8
        %s163 = scalar_lea.vmem [#allocation2], %s162
        // Predicated region
        $region33: #{tpu_custom_call.1} parent=31 // pred_check
          %p164 = pneg %p41
        $region34: #{tpu_custom_call.1} parent=31 // pred_check_branch
          %166 = sbr.rel (%p164) target = $region36
        $region35: #{tpu_custom_call.1} parent=31 // pred_region
          %167 = dma.done %s160, 128
        $region36: #{tpu_custom_call.1} parent=31 // pred_fallthru
          _
        %s168 = sand.u32 %s28, 1
        %s169 = scalar_lea.sflag [#allocation3], %s168
        %s170 = sand.u32 %s28, 1
        %s171 = smul.addr %s170, 8
        %s172 = scalar_lea.vmem [#allocation2], %s171
        %p173 = pneg %p41
        %p174 = pneg %p38
        %p175 = pneg %p62
        %p176 = pneg %p59
        %p177 = pneg %p83
        %p178 = pneg %p80
        %p179 = pneg %p109
        %p180 = pneg %p106
        %s181 = sand.u32 %s96, 1
        %s182 = scalar_lea.sflag [#allocation4], %s181
        %s183 = sand.u32 %s96, 1
        %s184 = smul.addr %s183, 8
        %s185 = scalar_lea.vmem [#allocation5], %s184
        %v186 = vld [vmem:[%s163] sm:$0xff]
        %v187 = vld [vmem:[%s1] sm:$0x3]
        %v188 = vld [vmem:[%s2] sm:$0x3]
        %v189 = vlaneseq
        %v190 = vshrl.u32 %v189, 7
        %v191 = vsub.s32 0, %v190
        %v192 = vrot.slane %v187, %v191
        %v193 = vmul.f32 %v186, %v192
        %194 = vadd.xlane.f32.xlu0 %v193
        %v195 = vpop.xlane.xlu0 %194
        %v196 = vlaneseq
        %v197 = vshrl.u32 %v196, 7
        %v198 = vsub.s32 0, %v197
        %v199 = vrot.slane %v188, %v198
        %v200 = vmul.f32 %v195, %v199
        %v201 = vlaneseq
        %v202 = vshrl.u32 %v201, 7
        %v203 = vsub.s32 1, %v202
        %v204 = vrot.slane %v187, %v203
        %v205 = vmul.f32 %v186, %v204
        %206 = vadd.xlane.f32.xlu0 %v205
        %v207 = vpop.xlane.xlu0 %206
        %v208 = vlaneseq
        %v209 = vshrl.u32 %v208, 7
        %v210 = vsub.s32 1, %v209
        %v211 = vrot.slane %v188, %v210
        %v212 = vmul.f32 %v207, %v211
        %v213 = vadd.f32 %v200, %v212
        %v214 = vadd.f32 %v213, 1.0
        %v215 = vmul.f32 %v186, %v214
        %216 = vst [vmem:[%s185] sm:$0xff] %v215
        %s217 = sand.u32 %s96, 1
        %s218 = scalar_lea.sflag [#allocation4], %s217
        %s219 = sand.u32 %s96, 1
        %s220 = smul.addr %s219, 8
        %s221 = scalar_lea.vmem [#allocation5], %s220
        // Predicated region
        $region37: #{tpu_custom_call.1} parent=31 // pred_check
          %p222 = pneg %p106
        $region38: #{tpu_custom_call.1} parent=31 // pred_check_branch
          %224 = sbr.rel (%p222) target = $region40
        $region39: #{tpu_custom_call.1} parent=31 // pred_region
          %s226 = ssub.s32 128, 128
          %227 = vsyncadd %s218, %s226
          %s228 = smul.addr %s20, 128
          %s229 = scalar_lea.hbm %s3, %s228
          %s231 = sshll.u32 %s221, 4
          %s232 = int_to_ptr.vmem [resolvable:$true] %s231
          %234 = dma.vmem_to_hbm [thread:$0]  %s232, 128, %s229, %s218
        $region40: #{tpu_custom_call.1} parent=31 // pred_fallthru
          _
      $region32: #{tpu_custom_call.1} parent=5 // pred_fallthru
        _
      %p235 = scmp.le.s32.totalorder 2, %s15
      // Predicated region
      $region41: #{tpu_custom_call.1} parent=5 // pred_check
        %p236 = pneg %p235
      $region42: #{tpu_custom_call.1} parent=5 // pred_check_branch
        %238 = sbr.rel (%p236) target = $region44
      $region43: #{tpu_custom_call.1} parent=5 // pred_region
        %s239 = ssub.s32 %s15, 2
        // Predicated region
        $region45: #{tpu_custom_call.1} parent=43 // pred_check
          %p240 = pneg %p112
        $region46: #{tpu_custom_call.1} parent=43 // pred_check_branch
          %242 = sbr.rel (%p240) target = $region48
        $region47: #{tpu_custom_call.1} parent=43 // pred_region
          %s243 = sand.u32 %s97, 1
          %s244 = scalar_lea.sflag [#allocation4], %s243
          %s245 = sand.u32 %s97, 1
          %s246 = smul.addr %s245, 8
          %s247 = scalar_lea.vmem [#allocation5], %s246
          %248 = dma.done %s244, 128
        $region48: #{tpu_custom_call.1} parent=43 // pred_fallthru
          _
      $region44: #{tpu_custom_call.1} parent=5 // pred_fallthru
        _
    $region6: #{tpu_custom_call.1} parent=1 // loop_footer
      %s19 = sadd.s32 1, %s15
    $region7: #{tpu_custom_call.1} parent=1 // loop_footer_branch
      %14 = sbr.rel target = $region3
    $region8: #{tpu_custom_call.1} parent=1 // loop_exit
      _
    %249 = vsyncpa [#allocation3], 1
    %s250 = scalar_lea.sflag [#allocation3], 1
    %251 = vsyncpa %s250, 1
    %252 = vsyncpa [#allocation4], 1
    %s253 = scalar_lea.sflag [#allocation4], 1
    %254 = vsyncpa %s253, 1

</llo_original>
